<compile_context>
chip_gen: v7x
topology: tpu7x:2x2x1
jax: 0.10.0
libtpu: 0.0.40
codegen_flags: <defaults>
</compile_context>

<pallas_src>
import functools
import math

import jax
import jax.numpy as jnp
from jax.experimental import pallas as pl
from jax.experimental.pallas import tpu as pltpu

INPUT_DIM = 4
XPAD = 8                 # Linear-1 K padded 4 -> 8 (MXU/sublane friendly)
EMBED_DIM = 128
PBLK_ROWS = 16           # packed param block: rows 0-5 vectors, rows 8-11 W1
TB_MAX = 2048            # max rows per grid step
MEGACORE_MIN_ROWS = 512  # above this, force an even block count for v7x's 2 TCs
LN_EPS = 1e-5
_INV_SQRT2 = 1.0 / math.sqrt(2.0)


def _round_up(n, m):
    return ((n + m - 1) // m) * m


def _layernorm(h, gamma, beta):
    # Two-pass (centered) variance: matches torch LayerNorm numerics and avoids
    # E[x^2]-E[x]^2 cancellation; extra VALU cost is negligible vs. the erf GELUs.
    mean = jnp.mean(h, axis=-1, keepdims=True)
    d = h - mean
    var = jnp.mean(d * d, axis=-1, keepdims=True)
    inv = jax.lax.rsqrt(var + LN_EPS)
    return d * inv * gamma + beta


def _gelu_exact(h):
    # matches torch.nn.GELU() default (erf formulation)
    return 0.5 * h * (1.0 + jax.lax.erf(h * _INV_SQRT2))


def encoder_kernel(x_ref, p_ref, w2_ref, o_ref):
    x = x_ref[...]                               # (tb, 8) f32; lanes 4..7 are zero
    b1, g1, be1 = p_ref[0:1, :], p_ref[1:2, :], p_ref[2:3, :]
    b2, g2, be2 = p_ref[3:4, :], p_ref[4:5, :], p_ref[5:6, :]
    w1 = p_ref[8:16, :]                          # (8, 128); rows 4..7 are zero

    # Linear 1 on the MXU (K padded 4->8 with zeros; math identical to x4 @ W1)
    h = jnp.dot(x, w1, preferred_element_type=jnp.float32) + b1
    h = _gelu_exact(_layernorm(h, g1, be1))

    # Linear 2: (tb,128) x (128,128) MXU matmul
    h = jnp.dot(h, w2_ref[...], preferred_element_type=jnp.float32) + b2
    h = _gelu_exact(_layernorm(h, g2, be2))

    o_ref[...] = h.astype(o_ref.dtype)


def pack_params(params):
    """One-time packing (hoisted out of the per-call path).

    Returns (param_block, w2):
      param_block: (16, 128) rows 0-5 = b1,g1,be1,b2,g2,be2 ; rows 8-11 = W1
      w2:          (128, 128)
    """
    w1, b1, g1, be1, w2, b2, g2, be2 = params
    blk = jnp.zeros((PBLK_ROWS, EMBED_DIM), jnp.float32)
    blk = blk.at[0].set(b1).at[1].set(g1).at[2].set(be1)
    blk = blk.at[3].set(b2).at[4].set(g2).at[5].set(be2)
    blk = blk.at[8:8 + INPUT_DIM].set(w1)        # rows 12..15 stay zero (K pad)
    return blk, w2


@jax.jit
def stellar_param_encoder(x, param_blk, w2):
    """x: (B, INPUT_DIM) float32. Returns (B, EMBED_DIM) float32."""
    B = x.shape[0]

    # Block count: amortize step overhead with big tiles; on v7x make sure there
    # are >=2 balanced blocks once B is large enough so both TCs get work.
    num_blocks = max(1, -(-B // TB_MAX))
    if B >= MEGACORE_MIN_ROWS:
        num_blocks = max(2, num_blocks)
        num_blocks += num_blocks % 2             # round up to even
    tb = _round_up(-(-B // num_blocks), 8)
    b_pad = num_blocks * tb

    # Lane-pad K 4->8 (always) and row-pad the ragged tail (only if needed).
    x_p = jnp.pad(x, ((0, b_pad - B), (0, XPAD - INPUT_DIM)))

    cost = pl.CostEstimate(
        flops=2 * b_pad * EMBED_DIM * (XPAD + EMBED_DIM) + 12 * b_pad * EMBED_DIM,
        transcendentals=2 * b_pad * EMBED_DIM,
        bytes_accessed=4 * b_pad * (XPAD + EMBED_DIM)
        + 4 * (PBLK_ROWS * EMBED_DIM + EMBED_DIM * EMBED_DIM),
    )

    out = pl.pallas_call(
        encoder_kernel,
        out_shape=jax.ShapeDtypeStruct((b_pad, EMBED_DIM), jnp.float32),
        grid_spec=pltpu.PrefetchScalarGridSpec(
            num_scalar_prefetch=0,
            grid=(num_blocks,),
            in_specs=[
                pl.BlockSpec((tb, XPAD), lambda i: (i, 0)),              # x tile
                pl.BlockSpec((PBLK_ROWS, EMBED_DIM), lambda i: (0, 0)),  # packed b/g/be + W1 (resident)
                pl.BlockSpec((EMBED_DIM, EMBED_DIM), lambda i: (0, 0)),  # W2 (resident)
            ],
            out_specs=pl.BlockSpec((tb, EMBED_DIM), lambda i: (i, 0)),
        ),
        compiler_params=pltpu.CompilerParams(
            dimension_semantics=("parallel",)),  # v7x: shard row blocks over 2 TCs
        cost_estimate=cost,
    )(x_p, param_blk, w2)

    if b_pad != B:                               # skip the copy when no padding
        out = out[:B]
    return out


def init_params(key):
    """Deterministic synthetic parameters matching nn.Linear/LayerNorm shapes."""
    k1, k2, k3, k4 = jax.random.split(key, 4)
    bound1 = 1.0 / math.sqrt(INPUT_DIM)
    bound2 = 1.0 / math.sqrt(EMBED_DIM)
    # stored as (in, out) so the kernel does x @ W (== x @ W_torch.T)
    w1 = jax.random.uniform(k1, (INPUT_DIM, EMBED_DIM), jnp.float32, -bound1, bound1)
    b1 = jax.random.uniform(k2, (EMBED_DIM,), jnp.float32, -bound1, bound1)
    w2 = jax.random.uniform(k3, (EMBED_DIM, EMBED_DIM), jnp.float32, -bound2, bound2)
    b2 = jax.random.uniform(k4, (EMBED_DIM,), jnp.float32, -bound2, bound2)
    g1 = jnp.ones((EMBED_DIM,), jnp.float32)
    be1 = jnp.zeros((EMBED_DIM,), jnp.float32)
    g2 = jnp.ones((EMBED_DIM,), jnp.float32)
    be2 = jnp.zeros((EMBED_DIM,), jnp.float32)
    return (w1, b1, g1, be1, w2, b2, g2, be2)


def reference(x, params):
    w1, b1, g1, be1, w2, b2, g2, be2 = params

    def ln(h, g, b):
        m = h.mean(-1, keepdims=True)
        v = ((h - m) ** 2).mean(-1, keepdims=True)
        return (h - m) / jnp.sqrt(v + LN_EPS) * g + b

    gelu = lambda h: 0.5 * h * (1.0 + jax.lax.erf(h / jnp.sqrt(2.0)))
    h = gelu(ln(x @ w1 + b1, g1, be1))
    h = gelu(ln(h @ w2 + b2, g2, be2))
    return h


if __name__ == "__main__":
    key = jax.random.PRNGKey(0)
    kx, kp, kx2 = jax.random.split(key, 3)
    params = init_params(kp)
    param_blk, w2 = pack_params(params)          # packed once, reused per call

    # small batch, not a multiple of 8 -> exercises the padded-tail path
    x = jax.random.normal(kx, (6, INPUT_DIM), jnp.float32)
    out = jax.block_until_ready(stellar_param_encoder(x, param_blk, w2))
    ref = reference(x, params)
    assert out.shape == (6, EMBED_DIM)
    assert jnp.allclose(out, ref, atol=1e-4, rtol=1e-4), "mismatch vs reference (small batch)"

    # larger batch -> exercises the even (megacore-friendly) multi-block grid + ragged tail
    x2 = jax.random.normal(kx2, (1100, INPUT_DIM), jnp.float32)
    out2 = jax.block_until_ready(stellar_param_encoder(x2, param_blk, w2))
    ref2 = reference(x2, params)
    assert out2.shape == (1100, EMBED_DIM)
    assert jnp.allclose(out2, ref2, atol=1e-4, rtol=1e-4), "mismatch vs reference (multi-block)"

    print("KERNEL_OK")
</pallas_src>

<mosaic_0001>
module attributes {stable_mosaic.version = 11 : i64} {
  func.func @encoder_kernel(%arg0: i32, %arg1: memref<8x8xf32, #tpu.memory_space<vmem>>, %arg2: memref<16x128xf32, #tpu.memory_space<vmem>>, %arg3: memref<128x128xf32, #tpu.memory_space<vmem>>, %arg4: memref<8x128xf32, #tpu.memory_space<vmem>>) attributes {dimension_semantics = [#tpu.dimension_semantics<parallel>], iteration_bounds = array<i64: 1>, scalar_prefetch = 0 : i64, scratch_operands = 0 : i64, tpu.core_type = #tpu.core_type<tc>, window_params = [{transform_indices = @transform_0, window_bounds = array<i64: 8, 8>}, {pipeline_mode = #tpu.pipeline_mode<synchronous>, transform_indices = @transform_1, window_bounds = array<i64: 16, 128>}, {pipeline_mode = #tpu.pipeline_mode<synchronous>, transform_indices = @transform_2, window_bounds = array<i64: 128, 128>}, {transform_indices = @transform_3, window_bounds = array<i64: 8, 128>}]} {
    %c0 = arith.constant 0 : index
    %c0_0 = arith.constant 0 : index
    %0 = vector.load %arg1[%c0, %c0_0] : memref<8x8xf32, #tpu.memory_space<vmem>>, vector<8x8xf32>
    %c0_1 = arith.constant 0 : index
    %c0_2 = arith.constant 0 : index
    %1 = vector.load %arg2[%c0_1, %c0_2] : memref<16x128xf32, #tpu.memory_space<vmem>>, vector<1x128xf32>
    %c1 = arith.constant 1 : index
    %c0_3 = arith.constant 0 : index
    %2 = vector.load %arg2[%c1, %c0_3] : memref<16x128xf32, #tpu.memory_space<vmem>>, vector<1x128xf32>
    %c2 = arith.constant 2 : index
    %c0_4 = arith.constant 0 : index
    %3 = vector.load %arg2[%c2, %c0_4] : memref<16x128xf32, #tpu.memory_space<vmem>>, vector<1x128xf32>
    %c3 = arith.constant 3 : index
    %c0_5 = arith.constant 0 : index
    %4 = vector.load %arg2[%c3, %c0_5] : memref<16x128xf32, #tpu.memory_space<vmem>>, vector<1x128xf32>
    %c4 = arith.constant 4 : index
    %c0_6 = arith.constant 0 : index
    %5 = vector.load %arg2[%c4, %c0_6] : memref<16x128xf32, #tpu.memory_space<vmem>>, vector<1x128xf32>
    %c5 = arith.constant 5 : index
    %c0_7 = arith.constant 0 : index
    %6 = vector.load %arg2[%c5, %c0_7] : memref<16x128xf32, #tpu.memory_space<vmem>>, vector<1x128xf32>
    %c8 = arith.constant 8 : index
    %c0_8 = arith.constant 0 : index
    %7 = vector.load %arg2[%c8, %c0_8] : memref<16x128xf32, #tpu.memory_space<vmem>>, vector<8x128xf32>
    %cst = arith.constant dense<0.000000e+00> : vector<8x128xf32>
    %8 = tpu.matmul %0, %7, %cst {dimension_numbers = #tpu.dot_dimension_numbers<[1], [0], [0], [1], [0, 0, 1, 1], [], []>} : vector<8x8xf32>, vector<8x128xf32>, vector<8x128xf32> -> vector<8x128xf32>
    %9 = vector.broadcast %1 : vector<1x128xf32> to vector<8x128xf32>
    %10 = arith.addf %8, %9 : vector<8x128xf32>
    %cst_9 = arith.constant dense<0.000000e+00> : vector<8xf32>
    %11 = vector.multi_reduction <add>, %10, %cst_9 [1] : vector<8x128xf32> to vector<8xf32>
    %12 = vector.shape_cast %11 : vector<8xf32> to vector<8x1xf32>
    %cst_10 = arith.constant 1.280000e+02 : f32
    %13 = vector.broadcast %cst_10 : f32 to vector<8x1xf32>
    %14 = arith.divf %12, %13 : vector<8x1xf32>
    %15 = vector.broadcast %14 : vector<8x1xf32> to vector<8x128xf32>
    %16 = arith.subf %10, %15 : vector<8x128xf32>
    %17 = arith.mulf %16, %16 : vector<8x128xf32>
    %cst_11 = arith.constant dense<0.000000e+00> : vector<8xf32>
    %18 = vector.multi_reduction <add>, %17, %cst_11 [1] : vector<8x128xf32> to vector<8xf32>
    %19 = vector.shape_cast %18 : vector<8xf32> to vector<8x1xf32>
    %cst_12 = arith.constant 1.280000e+02 : f32
    %20 = vector.broadcast %cst_12 : f32 to vector<8x1xf32>
    %21 = arith.divf %19, %20 : vector<8x1xf32>
    %cst_13 = arith.constant 9.99999974E-6 : f32
    %22 = vector.broadcast %cst_13 : f32 to vector<8x1xf32>
    %23 = arith.addf %21, %22 : vector<8x1xf32>
    %24 = math.rsqrt %23 : vector<8x1xf32>
    %25 = vector.broadcast %24 : vector<8x1xf32> to vector<8x128xf32>
    %26 = arith.mulf %16, %25 : vector<8x128xf32>
    %27 = vector.broadcast %2 : vector<1x128xf32> to vector<8x128xf32>
    %28 = arith.mulf %26, %27 : vector<8x128xf32>
    %29 = vector.broadcast %3 : vector<1x128xf32> to vector<8x128xf32>
    %30 = arith.addf %28, %29 : vector<8x128xf32>
    %cst_14 = arith.constant 5.000000e-01 : f32
    %31 = vector.broadcast %cst_14 : f32 to vector<8x128xf32>
    %32 = arith.mulf %31, %30 : vector<8x128xf32>
    %cst_15 = arith.constant 0.707106769 : f32
    %33 = vector.broadcast %cst_15 : f32 to vector<8x128xf32>
    %34 = arith.mulf %30, %33 : vector<8x128xf32>
    %35 = math.erf %34 : vector<8x128xf32>
    %cst_16 = arith.constant 1.000000e+00 : f32
    %36 = vector.broadcast %cst_16 : f32 to vector<8x128xf32>
    %37 = arith.addf %36, %35 : vector<8x128xf32>
    %38 = arith.mulf %32, %37 : vector<8x128xf32>
    %c0_17 = arith.constant 0 : index
    %c0_18 = arith.constant 0 : index
    %39 = vector.load %arg3[%c0_17, %c0_18] : memref<128x128xf32, #tpu.memory_space<vmem>>, vector<128x128xf32>
    %cst_19 = arith.constant dense<0.000000e+00> : vector<8x128xf32>
    %40 = tpu.matmul %38, %39, %cst_19 {dimension_numbers = #tpu.dot_dimension_numbers<[1], [0], [0], [1], [0, 0, 1, 1], [], []>} : vector<8x128xf32>, vector<128x128xf32>, vector<8x128xf32> -> vector<8x128xf32>
    %41 = vector.broadcast %4 : vector<1x128xf32> to vector<8x128xf32>
    %42 = arith.addf %40, %41 : vector<8x128xf32>
    %cst_20 = arith.constant dense<0.000000e+00> : vector<8xf32>
    %43 = vector.multi_reduction <add>, %42, %cst_20 [1] : vector<8x128xf32> to vector<8xf32>
    %44 = vector.shape_cast %43 : vector<8xf32> to vector<8x1xf32>
    %cst_21 = arith.constant 1.280000e+02 : f32
    %45 = vector.broadcast %cst_21 : f32 to vector<8x1xf32>
    %46 = arith.divf %44, %45 : vector<8x1xf32>
    %47 = vector.broadcast %46 : vector<8x1xf32> to vector<8x128xf32>
    %48 = arith.subf %42, %47 : vector<8x128xf32>
    %49 = arith.mulf %48, %48 : vector<8x128xf32>
    %cst_22 = arith.constant dense<0.000000e+00> : vector<8xf32>
    %50 = vector.multi_reduction <add>, %49, %cst_22 [1] : vector<8x128xf32> to vector<8xf32>
    %51 = vector.shape_cast %50 : vector<8xf32> to vector<8x1xf32>
    %cst_23 = arith.constant 1.280000e+02 : f32
    %52 = vector.broadcast %cst_23 : f32 to vector<8x1xf32>
    %53 = arith.divf %51, %52 : vector<8x1xf32>
    %cst_24 = arith.constant 9.99999974E-6 : f32
    %54 = vector.broadcast %cst_24 : f32 to vector<8x1xf32>
    %55 = arith.addf %53, %54 : vector<8x1xf32>
    %56 = math.rsqrt %55 : vector<8x1xf32>
    %57 = vector.broadcast %56 : vector<8x1xf32> to vector<8x128xf32>
    %58 = arith.mulf %48, %57 : vector<8x128xf32>
    %59 = vector.broadcast %5 : vector<1x128xf32> to vector<8x128xf32>
    %60 = arith.mulf %58, %59 : vector<8x128xf32>
    %61 = vector.broadcast %6 : vector<1x128xf32> to vector<8x128xf32>
    %62 = arith.addf %60, %61 : vector<8x128xf32>
    %cst_25 = arith.constant 5.000000e-01 : f32
    %63 = vector.broadcast %cst_25 : f32 to vector<8x128xf32>
    %64 = arith.mulf %63, %62 : vector<8x128xf32>
    %cst_26 = arith.constant 0.707106769 : f32
    %65 = vector.broadcast %cst_26 : f32 to vector<8x128xf32>
    %66 = arith.mulf %62, %65 : vector<8x128xf32>
    %67 = math.erf %66 : vector<8x128xf32>
    %cst_27 = arith.constant 1.000000e+00 : f32
    %68 = vector.broadcast %cst_27 : f32 to vector<8x128xf32>
    %69 = arith.addf %68, %67 : vector<8x128xf32>
    %70 = arith.mulf %64, %69 : vector<8x128xf32>
    %c0_28 = arith.constant 0 : index
    %c0_29 = arith.constant 0 : index
    %71 = vector.load %arg4[%c0_28, %c0_29] : memref<8x128xf32, #tpu.memory_space<vmem>>, vector<8x128xf32>
    tpu.vector_store %arg4[%c0_28, %c0_29], %70 {strides = array<i32>} : memref<8x128xf32, #tpu.memory_space<vmem>>, vector<8x128xf32>,
    return
  }
  func.func @transform_0(%arg0: i32) -> (i32, i32) {
    %c0_i32 = arith.constant 0 : i32
    %c0_i32_0 = arith.constant 0 : i32
    return %arg0, %c0_i32 : i32, i32
  }
  func.func @transform_1(%arg0: i32) -> (i32, i32) {
    %c0_i32 = arith.constant 0 : i32
    %c0_i32_0 = arith.constant 0 : i32
    %c0_i32_1 = arith.constant 0 : i32
    return %c0_i32, %c0_i32_0 : i32, i32
  }
  func.func @transform_2(%arg0: i32) -> (i32, i32) {
    %c0_i32 = arith.constant 0 : i32
    %c0_i32_0 = arith.constant 0 : i32
    %c0_i32_1 = arith.constant 0 : i32
    return %c0_i32, %c0_i32_0 : i32, i32
  }
  func.func @transform_3(%arg0: i32) -> (i32, i32) {
    %c0_i32 = arith.constant 0 : i32
    %c0_i32_0 = arith.constant 0 : i32
    return %arg0, %c0_i32 : i32, i32
  }
}

</mosaic_0001>

<llo_original>
// kernel: stellar_param_encoder.1
$region0: #{stellar_param_encoder.1}
  #allocation0 [shape = 'u32[]', space=smem, size = 0x4, offset = 0x4, fixed_abs, tag = 'smem constant byte address 0x4 - core index']
  #allocation1 [shape = 'u32[144,128]{1,0:T(1,128)}', space=vmem, size = 0x12000, scoped, tag = 'internal scratch']
  %s0 = inlined_call_operand.vmem [shape: f32[8,8], index: 0, kind: input, shape index: {}]
  %s1 = inlined_call_operand.vmem [shape: f32[16,128], index: 1, kind: input, shape index: {}]
  %s2 = inlined_call_operand.hbm [shape: f32[128,128], index: 2, kind: input, shape index: {}]
  %s3 = inlined_call_operand.hbm [shape: f32[8,128], index: 3, kind: output, shape index: {}]
  %s4 = sld [smem:[#allocation0]]
  $region26: #{stellar_param_encoder.1} parent=0
    _
  %s6 = ssub.s32 1, %s4
  %s7 = scalar_select 0, %s6, %s4
  $region1: #{stellar_param_encoder.1} parent=0
    #allocation2 [shape = 'u8[65536]{0}', space=vmem, size = 0x10000, scoped, tag = 'input window, operand 2, single buffered']
    #allocation3 [shape = 's32[1]{0}', space=sflag, size = 0x4, scoped, tag = 'scoped memory for stellar_param_encoder.1']
    #allocation4 [shape = 's32[1]{0}', space=sflag, size = 0x4, scoped, tag = 'scoped memory for stellar_param_encoder.1']
    #allocation5 [shape = 'u8[4096]{0}', space=vmem, size = 0x1000, scoped, tag = 'output window, operand 0, single buffered']
    %8 = vsyncpa [#allocation3], 0
    %9 = vsyncpa [#allocation4], 0
    // Predicated region
    $region2: #{stellar_param_encoder.1} parent=1 // pred_check
      _
    $region3: #{stellar_param_encoder.1} parent=1 // pred_check_branch
      %11 = sbr.rel (0) target = $region5
    $region4: #{stellar_param_encoder.1} parent=1 // pred_region
      _
    $region5: #{stellar_param_encoder.1} parent=1 // pred_fallthru
      _
    // Predicated region
    $region6: #{stellar_param_encoder.1} parent=1 // pred_check
      _
    $region7: #{stellar_param_encoder.1} parent=1 // pred_check_branch
      %13 = sbr.rel (0) target = $region9
    $region8: #{stellar_param_encoder.1} parent=1 // pred_region
      _
    $region9: #{stellar_param_encoder.1} parent=1 // pred_fallthru
      _
    // Predicated region
    $region10: #{stellar_param_encoder.1} parent=1 // pred_check
      _
    $region11: #{stellar_param_encoder.1} parent=1 // pred_check_branch
      %15 = sbr.rel (0) target = $region13
    $region12: #{stellar_param_encoder.1} parent=1 // pred_region
      %s17 = ssub.s32 2048, 2048
      %18 = vsyncadd [#allocation3], %s17
      %s19 = sshll.u32 [#allocation2], 4
      %s20 = int_to_ptr.vmem [resolvable:$true] %s19
      %25 = dma.hbm_to_vmem [thread:$0]  %s2, 2048, %s20, [#allocation3], 128, 128, 8
    $region13: #{stellar_param_encoder.1} parent=1 // pred_fallthru
      _
    // Predicated region
    $region14: #{stellar_param_encoder.1} parent=1 // pred_check
      _
    $region15: #{stellar_param_encoder.1} parent=1 // pred_check_branch
      %27 = sbr.rel (0) target = $region17
    $region16: #{stellar_param_encoder.1} parent=1 // pred_region
      %28 = dma.done [#allocation3], 2048
    $region17: #{stellar_param_encoder.1} parent=1 // pred_fallthru
      _
    %v29 = vld [vmem:[%s0] sm:$0xff]
    %v30 = vld [vmem:[%s1] sm:$0x1]
    %v31 = vld [vmem:[%s1 + $0x1] sm:$0x1]
    %v32 = vld [vmem:[%s1 + $0x2] sm:$0x1]
    %v33 = vld [vmem:[%s1 + $0x3] sm:$0x1]
    %v34 = vld [vmem:[%s1 + $0x4] sm:$0x1]
    %v35 = vld [vmem:[%s1 + $0x5] sm:$0x1]
    %v36 = vld [vmem:[%s1 + $0x8] sm:$0xff]
    %v37 = vlaneseq
    %v38 = vshrl.u32 %v37, 7
    %v39 = vsub.s32 0, %v38
    %v40 = vrot.slane %v30, %v39
    %vm41 = vcmask 64512
    %v43 = vsel %vm41, %v29, 0
    %45 = vmatprep.subr.mxu0 0.0
    %46 = vmatpush1.msra.mxu0 %v36
    %47 = vmatprep.subr.mxu0 0.0
    %48 = vmatpush1.msra.mxu0 0.0
    %49 = vmatprep.subr.mxu0 0.0
    %50 = vmatpush1.msra.mxu0 0.0
    %51 = vmatprep.subr.mxu0 0.0
    %52 = vmatpush1.msra.mxu0 0.0
    %53 = vmatprep.subr.mxu0 0.0
    %54 = vmatpush1.msra.mxu0 0.0
    %55 = vmatprep.subr.mxu0 0.0
    %56 = vmatpush1.msra.mxu0 0.0
    %57 = vmatprep.subr.mxu0 0.0
    %58 = vmatpush1.msra.mxu0 0.0
    %59 = vmatprep.subr.mxu0 0.0
    %60 = vmatpush1.msra.mxu0 0.0
    %61 = vmatprep.subr.mxu0 0.0
    %62 = vmatpush1.msra.mxu0 0.0
    %63 = vmatprep.subr.mxu0 0.0
    %64 = vmatpush1.msra.mxu0 0.0
    %65 = vmatprep.subr.mxu0 0.0
    %66 = vmatpush1.msra.mxu0 0.0
    %67 = vmatprep.subr.mxu0 0.0
    %68 = vmatpush1.msra.mxu0 0.0
    %69 = vmatprep.subr.mxu0 0.0
    %70 = vmatpush1.msra.mxu0 0.0
    %71 = vmatprep.subr.mxu0 0.0
    %72 = vmatpush1.msra.mxu0 0.0
    %73 = vmatprep.subr.mxu0 0.0
    %74 = vmatpush1.msra.mxu0 0.0
    %75 = vmatprep.subr.mxu0 0.0
    %76 = vmatpush1.msra.mxu0 0.0
    %77 = vmatprep.subr.mxu0 0.0
    %78 = vmatpush1.msra.mxu0 0.0
    %79 = vmatprep.subr.mxu0 0.0
    %80 = vmatpush1.msra.mxu0 0.0
    %81 = vmatprep.subr.mxu0 0.0
    %82 = vmatpush1.msra.mxu0 0.0
    %83 = vmatprep.subr.mxu0 0.0
    %84 = vmatpush1.msra.mxu0 0.0
    %85 = vmatprep.subr.mxu0 0.0
    %86 = vmatpush1.msra.mxu0 0.0
    %87 = vmatprep.subr.mxu0 0.0
    %88 = vmatpush1.msra.mxu0 0.0
    %89 = vmatprep.subr.mxu0 0.0
    %90 = vmatpush1.msra.mxu0 0.0
    %91 = vmatprep.subr.mxu0 0.0
    %92 = vmatpush1.msra.mxu0 0.0
    %93 = vmatprep.subr.mxu0 0.0
    %94 = vmatpush1.msra.mxu0 0.0
    %95 = vmatprep.subr.mxu0 0.0
    %96 = vmatpush1.msra.mxu0 0.0
    %97 = vmatprep.subr.mxu0 0.0
    %98 = vmatpush1.msra.mxu0 0.0
    %99 = vmatprep.subr.mxu0 0.0
    %100 = vmatpush1.msra.mxu0 0.0
    %101 = vmatprep.subr.mxu0 0.0
    %102 = vmatpush1.msra.mxu0 0.0
    %103 = vmatprep.subr.mxu0 0.0
    %104 = vmatpush1.msra.mxu0 0.0
    %105 = vmatprep.subr.mxu0 0.0
    %106 = vmatpush1.msra.mxu0 0.0
    %107 = vmatprep.subr.mxu0 0.0
    %108 = vmatpush1.msra.mxu0 0.0
    %109 = vmatprep.mubr.f32.mxu0 0.0
    %110 = vmatmul.mubr.f32.gmra.mrb[0].mxu0 %v43
    %v111 = vpop.f32.mrb[0].mxu0
    %v112 = vadd.f32 %v40, %v111
    %v113 = vpop.f32.mrb[0].mxu0
    %114 = vdwg.mxu0
    %115 = vadd.xlane.f32.xlu0 %v112
    %v116 = vpop.xlane.xlu0 %115
    %v117 = vrcp.pop 128.0
    %v118 = vmul.f32 %v116, %v117
    %v119 = vsub.f32 %v112, %v118
    %v120 = vmul.f32 %v119, %v119
    %121 = vadd.xlane.f32.xlu0 %v120
    %v122 = vpop.xlane.xlu0 %121
    %v123 = vmul.f32 %v122, %v117
    %v124 = vadd.f32 %v123, 1e-05
    %v125 = vrsqrt.pop %v124
    %v126 = vmul.f32 %v119, %v125
    %v127 = vlaneseq
    %v128 = vshrl.u32 %v127, 7
    %v129 = vsub.s32 0, %v128
    %v130 = vrot.slane %v31, %v129
    %v131 = vmul.f32 %v126, %v130
    %v132 = vlaneseq
    %v133 = vshrl.u32 %v132, 7
    %v134 = vsub.s32 0, %v133
    %v135 = vrot.slane %v32, %v134
    %v136 = vadd.f32 %v131, %v135
    %v137 = vmul.f32 %v136, 0.5
    %v138 = vmul.f32 %v136, 0.70710677
    %v139 = verf.f32.pop %v138
    %v140 = vadd.f32 %v139, 1.0
    %v141 = vmul.f32 %v137, %v140
    %v142 = vld [vmem:[#allocation2] sm:$0xff]
    %v143 = vld [vmem:[#allocation2 + $0x8] sm:$0xff]
    %v144 = vld [vmem:[#allocation2 + $0x10] sm:$0xff]
    %v145 = vld [vmem:[#allocation2 + $0x18] sm:$0xff]
    %v146 = vld [vmem:[#allocation2 + $0x20] sm:$0xff]
    %v147 = vld [vmem:[#allocation2 + $0x28] sm:$0xff]
    %v148 = vld [vmem:[#allocation2 + $0x30] sm:$0xff]
    %v149 = vld [vmem:[#allocation2 + $0x38] sm:$0xff]
    %v150 = vld [vmem:[#allocation2 + $0x40] sm:$0xff]
    %v151 = vld [vmem:[#allocation2 + $0x48] sm:$0xff]
    %v152 = vld [vmem:[#allocation2 + $0x50] sm:$0xff]
    %v153 = vld [vmem:[#allocation2 + $0x58] sm:$0xff]
    %v154 = vld [vmem:[#allocation2 + $0x60] sm:$0xff]
    %v155 = vld [vmem:[#allocation2 + $0x68] sm:$0xff]
    %v156 = vld [vmem:[#allocation2 + $0x70] sm:$0xff]
    %v157 = vld [vmem:[#allocation2 + $0x78] sm:$0xff]
    %v158 = vlaneseq
    %v159 = vshrl.u32 %v158, 7
    %v160 = vsub.s32 0, %v159
    %v161 = vrot.slane %v33, %v160
    %162 = vmatprep.subr.mxu0 0.0
    %163 = vmatpush1.msra.mxu0 %v142
    %164 = vmatprep.subr.mxu0 0.0
    %165 = vmatpush1.msra.mxu0 %v143
    %166 = vmatprep.subr.mxu0 0.0
    %167 = vmatpush1.msra.mxu0 %v144
    %168 = vmatprep.subr.mxu0 0.0
    %169 = vmatpush1.msra.mxu0 %v145
    %170 = vmatprep.subr.mxu0 0.0
    %171 = vmatpush1.msra.mxu0 %v146
    %172 = vmatprep.subr.mxu0 0.0
    %173 = vmatpush1.msra.mxu0 %v147
    %174 = vmatprep.subr.mxu0 0.0
    %175 = vmatpush1.msra.mxu0 %v148
    %176 = vmatprep.subr.mxu0 0.0
    %177 = vmatpush1.msra.mxu0 %v149
    %178 = vmatprep.subr.mxu0 0.0
    %179 = vmatpush1.msra.mxu0 %v150
    %180 = vmatprep.subr.mxu0 0.0
    %181 = vmatpush1.msra.mxu0 %v151
    %182 = vmatprep.subr.mxu0 0.0
    %183 = vmatpush1.msra.mxu0 %v152
    %184 = vmatprep.subr.mxu0 0.0
    %185 = vmatpush1.msra.mxu0 %v153
    %186 = vmatprep.subr.mxu0 0.0
    %187 = vmatpush1.msra.mxu0 %v154
    %188 = vmatprep.subr.mxu0 0.0
    %189 = vmatpush1.msra.mxu0 %v155
    %190 = vmatprep.subr.mxu0 0.0
    %191 = vmatpush1.msra.mxu0 %v156
    %192 = vmatprep.subr.mxu0 0.0
    %193 = vmatpush1.msra.mxu0 %v157
    %194 = vmatprep.subr.mxu0 0.0
    %195 = vmatpush1.msra.mxu0 0.0
    %196 = vmatprep.subr.mxu0 0.0
    %197 = vmatpush1.msra.mxu0 0.0
    %198 = vmatprep.subr.mxu0 0.0
    %199 = vmatpush1.msra.mxu0 0.0
    %200 = vmatprep.subr.mxu0 0.0
    %201 = vmatpush1.msra.mxu0 0.0
    %202 = vmatprep.subr.mxu0 0.0
    %203 = vmatpush1.msra.mxu0 0.0
    %204 = vmatprep.subr.mxu0 0.0
    %205 = vmatpush1.msra.mxu0 0.0
    %206 = vmatprep.subr.mxu0 0.0
    %207 = vmatpush1.msra.mxu0 0.0
    %208 = vmatprep.subr.mxu0 0.0
    %209 = vmatpush1.msra.mxu0 0.0
    %210 = vmatprep.subr.mxu0 0.0
    %211 = vmatpush1.msra.mxu0 0.0
    %212 = vmatprep.subr.mxu0 0.0
    %213 = vmatpush1.msra.mxu0 0.0
    %214 = vmatprep.subr.mxu0 0.0
    %215 = vmatpush1.msra.mxu0 0.0
    %216 = vmatprep.subr.mxu0 0.0
    %217 = vmatpush1.msra.mxu0 0.0
    %218 = vmatprep.subr.mxu0 0.0
    %219 = vmatpush1.msra.mxu0 0.0
    %220 = vmatprep.subr.mxu0 0.0
    %221 = vmatpush1.msra.mxu0 0.0
    %222 = vmatprep.subr.mxu0 0.0
    %223 = vmatpush1.msra.mxu0 0.0
    %224 = vmatprep.subr.mxu0 0.0
    %225 = vmatpush1.msra.mxu0 0.0
    %226 = vmatprep.mubr.f32.mxu0 0.0
    %227 = vmatmul.mubr.f32.gmra.mrb[0].mxu0 %v141
    %v228 = vpop.f32.mrb[0].mxu0
    %v229 = vadd.f32 %v161, %v228
    %v230 = vpop.f32.mrb[0].mxu0
    %231 = vdwg.mxu0
    %232 = vadd.xlane.f32.xlu0 %v229
    %v233 = vpop.xlane.xlu0 %232
    %v234 = vmul.f32 %v233, %v117
    %v235 = vsub.f32 %v229, %v234
    %v236 = vmul.f32 %v235, %v235
    %237 = vadd.xlane.f32.xlu0 %v236
    %v238 = vpop.xlane.xlu0 %237
    %v239 = vmul.f32 %v238, %v117
    %v240 = vadd.f32 %v239, 1e-05
    %v241 = vrsqrt.pop %v240
    %v242 = vmul.f32 %v235, %v241
    %v243 = vlaneseq
    %v244 = vshrl.u32 %v243, 7
    %v245 = vsub.s32 0, %v244
    %v246 = vrot.slane %v34, %v245
    %v247 = vmul.f32 %v242, %v246
    %v248 = vlaneseq
    %v249 = vshrl.u32 %v248, 7
    %v250 = vsub.s32 0, %v249
    %v251 = vrot.slane %v35, %v250
    %v252 = vadd.f32 %v247, %v251
    %v253 = vmul.f32 %v252, 0.5
    %v254 = vmul.f32 %v252, 0.70710677
    %v255 = verf.f32.pop %v254
    %v256 = vadd.f32 %v255, 1.0
    %v257 = vmul.f32 %v253, %v256
    %258 = vst [vmem:[#allocation5] sm:$0xff] %v257
    // Predicated region
    $region18: #{stellar_param_encoder.1} parent=1 // pred_check
      _
    $region19: #{stellar_param_encoder.1} parent=1 // pred_check_branch
      %260 = sbr.rel (0) target = $region21
    $region20: #{stellar_param_encoder.1} parent=1 // pred_region
      %s262 = ssub.s32 128, 128
      %263 = vsyncadd [#allocation4], %s262
      %s265 = sshll.u32 [#allocation5], 4
      %s266 = int_to_ptr.vmem [resolvable:$true] %s265
      %268 = dma.vmem_to_hbm [thread:$0]  %s266, 128, %s3, [#allocation4]
    $region21: #{stellar_param_encoder.1} parent=1 // pred_fallthru
      _
    // Predicated region
    $region22: #{stellar_param_encoder.1} parent=1 // pred_check
      _
    $region23: #{stellar_param_encoder.1} parent=1 // pred_check_branch
      %270 = sbr.rel (0) target = $region25
    $region24: #{stellar_param_encoder.1} parent=1 // pred_region
      %271 = dma.done [#allocation4], 128
    $region25: #{stellar_param_encoder.1} parent=1 // pred_fallthru
      _
    %272 = vsyncpa [#allocation3], 1
    %273 = vsyncpa [#allocation4], 1

</llo_original>
